<compile_context>
chip_gen: v7x
topology: tpu7x:2x2x1
jax: 0.10.0
libtpu: 0.0.40
codegen_flags: <defaults>
</compile_context>

<pallas_src>
import jax
import jax.numpy as jnp
from jax.experimental import pallas as pl
from jax.experimental.pallas import tpu as pltpu

_LANE = 128
_SUBLANE = 8


def _next_char_kernel(idx_ref, emb_ref, w1_ref, b1_ref, w2_ref, b2_ref, o_ref):
    # idx_ref : (TB, block_size) int32   token indices for this batch tile
    # emb_ref : (vocab, emb_dim)  f32    whole embedding table (VMEM resident)
    # w1_ref  : (block_size*emb_dim, H_pad) f32   hidden zero-padded to 128 lanes
    # b1_ref  : (1, H_pad)                f32
    # w2_ref  : (H_pad, V_pad)            f32     vocab zero-padded to 128 lanes
    # b2_ref  : (1, V_pad)                f32
    # o_ref   : (TB, V_pad)               f32
    tb, block_size = idx_ref.shape
    vocab, emb_dim = emb_ref.shape
    h_pad = w1_ref.shape[1]

    idx = idx_ref[...]                      # (TB, block_size) int32
    emb = emb_ref[...]                      # (vocab, emb_dim)
    w1 = w1_ref[...]                        # (block_size*emb_dim, H_pad)

    vocab_iota = jax.lax.broadcasted_iota(jnp.int32, (tb, vocab), 1)

    acc = jnp.zeros((tb, h_pad), dtype=jnp.float32)
    # Static unroll over the (tiny) context length.
    for p in range(block_size):
        # Fold embedding into lin1:  (onehot @ emb) @ w1_p == onehot @ (emb @ w1_p).
        # emb @ w1_p is batch-independent and tiny (vocab x H_pad), so per batch
        # tile we pay only one batch-sized matmul per position instead of two.
        w1_p = w1[p * emb_dim:(p + 1) * emb_dim, :]                        # (emb_dim, H_pad)
        wc_p = jnp.dot(emb, w1_p, preferred_element_type=jnp.float32)      # (vocab, H_pad)
        onehot = (idx[:, p:p + 1] == vocab_iota).astype(jnp.float32)       # (TB, vocab)
        acc = acc + jnp.dot(onehot, wc_p, preferred_element_type=jnp.float32)

    # EUP transcendental, overlaps for free with MXU work. Padded hidden lanes are
    # sin(0 + 0) = 0 and the corresponding w2 rows are zero -> no contribution.
    h = jnp.sin(acc + b1_ref[...])
    out = jnp.dot(h, w2_ref[...], preferred_element_type=jnp.float32) + b2_ref[...]
    o_ref[...] = out.astype(o_ref.dtype)


def next_char_forward(x_idx, emb, w1, b1, w2, b2, *, batch_tile=None):
    """Forward pass matching the PyTorch NextChar module.

    x_idx : (B, block_size) int32 token indices
    emb   : (vocab_size, emb_dim) f32
    w1    : (block_size*emb_dim, hidden_size) f32  (transposed vs torch Linear)
    b1    : (hidden_size,) f32
    w2    : (hidden_size, vocab_size) f32
    b2    : (vocab_size,) f32
    returns (B, vocab_size) f32 logits
    """
    B, block_size = x_idx.shape
    vocab_size, emb_dim = emb.shape
    d_in, hidden_size = w1.shape
    assert d_in == block_size * emb_dim
    V = w2.shape[1]

    # --- lane-pad hidden and vocab/output dims to multiples of 128 ----------
    h_pad = pl.cdiv(hidden_size, _LANE) * _LANE
    v_pad = pl.cdiv(V, _LANE) * _LANE
    w1_p = jnp.pad(w1, ((0, 0), (0, h_pad - hidden_size)))
    b1_p = jnp.pad(b1, (0, h_pad - hidden_size)).reshape(1, h_pad)
    w2_p = jnp.pad(w2, ((0, h_pad - hidden_size), (0, v_pad - V)))
    b2_p = jnp.pad(b2, (0, v_pad - V)).reshape(1, v_pad)

    # --- batch tiling: weights stay resident, grid only walks the batch -----
    if batch_tile is None:
        batch_tile = min(512, pl.cdiv(B, _SUBLANE) * _SUBLANE)  # multiple of 8 sublanes
    b_pad = pl.cdiv(B, batch_tile) * batch_tile
    x_idx_p = x_idx.astype(jnp.int32)
    if b_pad != B:
        x_idx_p = jnp.pad(x_idx_p, ((0, b_pad - B), (0, 0)))    # padded rows -> index 0
    n_tiles = b_pad // batch_tile

    out = pl.pallas_call(
        _next_char_kernel,
        out_shape=jax.ShapeDtypeStruct((b_pad, v_pad), jnp.float32),
        grid=(n_tiles,),
        in_specs=[
            pl.BlockSpec((batch_tile, block_size), lambda i: (i, 0)),  # x_idx (walks batch)
            pl.BlockSpec((vocab_size, emb_dim), lambda i: (0, 0)),     # emb (resident)
            pl.BlockSpec((d_in, h_pad), lambda i: (0, 0)),             # w1  (resident)
            pl.BlockSpec((1, h_pad), lambda i: (0, 0)),                # b1  (resident)
            pl.BlockSpec((h_pad, v_pad), lambda i: (0, 0)),            # w2  (resident)
            pl.BlockSpec((1, v_pad), lambda i: (0, 0)),                # b2  (resident)
        ],
        out_specs=pl.BlockSpec((batch_tile, v_pad), lambda i: (i, 0)),
        compiler_params=pltpu.CompilerParams(
            dimension_semantics=("parallel",)),   # megacore-shard batch on v7x
    )(x_idx_p, emb, w1_p, b1_p, w2_p, b2_p)

    # Slice away batch padding and the zero-padded vocab lanes.
    return out[:B, :V]


if __name__ == "__main__":
    # Small shapes consistent with the module: block_size=3, vocab_size=27
    # (26 lowercase letters + 1), emb_dim=8, hidden_size=50 (slider default), batch=8.
    block_size = 3
    vocab_size = 27
    emb_dim = 8
    hidden_size = 50
    batch = 8

    key = jax.random.PRNGKey(0)
    k_idx, k_emb, k_w1, k_b1, k_w2, k_b2 = jax.random.split(key, 6)

    x_idx = jax.random.randint(k_idx, (batch, block_size), 0, vocab_size, dtype=jnp.int32)
    emb = jax.random.normal(k_emb, (vocab_size, emb_dim), dtype=jnp.float32)
    w1 = jax.random.normal(k_w1, (block_size * emb_dim, hidden_size), dtype=jnp.float32) * 0.1
    b1 = jax.random.normal(k_b1, (hidden_size,), dtype=jnp.float32) * 0.1
    w2 = jax.random.normal(k_w2, (hidden_size, vocab_size), dtype=jnp.float32) * 0.1
    b2 = jax.random.normal(k_b2, (vocab_size,), dtype=jnp.float32) * 0.1

    out = next_char_forward(x_idx, emb, w1, b1, w2, b2)
    out = jax.block_until_ready(out)

    # Pure-JAX reference of the same forward semantics (emb -> flatten -> sin(lin1) -> lin2).
    x_flat = jnp.take(emb, x_idx, axis=0).reshape(batch, -1)
    ref = jnp.sin(x_flat @ w1 + b1) @ w2 + b2
    assert out.shape == (batch, vocab_size)
    assert jnp.allclose(out, ref, atol=1e-5, rtol=1e-5), float(jnp.max(jnp.abs(out - ref)))

    print("KERNEL_OK")
</pallas_src>

<mosaic_0001>
module attributes {stable_mosaic.version = 11 : i64} {
  func.func @_next_char_kernel(%arg0: i32, %arg1: memref<8x3xi32, #tpu.memory_space<vmem>>, %arg2: memref<27x8xf32, #tpu.memory_space<vmem>>, %arg3: memref<24x128xf32, #tpu.memory_space<vmem>>, %arg4: memref<1x128xf32, #tpu.memory_space<vmem>>, %arg5: memref<128x128xf32, #tpu.memory_space<vmem>>, %arg6: memref<1x128xf32, #tpu.memory_space<vmem>>, %arg7: memref<8x128xf32, #tpu.memory_space<vmem>>) attributes {dimension_semantics = [#tpu.dimension_semantics<parallel>], iteration_bounds = array<i64: 1>, scalar_prefetch = 0 : i64, scratch_operands = 0 : i64, tpu.core_type = #tpu.core_type<tc>, window_params = [{transform_indices = @transform_0, window_bounds = array<i64: 8, 3>}, {pipeline_mode = #tpu.pipeline_mode<synchronous>, transform_indices = @transform_1, window_bounds = array<i64: 27, 8>}, {pipeline_mode = #tpu.pipeline_mode<synchronous>, transform_indices = @transform_2, window_bounds = array<i64: 24, 128>}, {pipeline_mode = #tpu.pipeline_mode<synchronous>, transform_indices = @transform_3, window_bounds = array<i64: 1, 128>}, {pipeline_mode = #tpu.pipeline_mode<synchronous>, transform_indices = @transform_4, window_bounds = array<i64: 128, 128>}, {pipeline_mode = #tpu.pipeline_mode<synchronous>, transform_indices = @transform_5, window_bounds = array<i64: 1, 128>}, {transform_indices = @transform_6, window_bounds = array<i64: 8, 128>}]} {
    %c0 = arith.constant 0 : index
    %c0_0 = arith.constant 0 : index
    %0 = vector.load %arg1[%c0, %c0_0] : memref<8x3xi32, #tpu.memory_space<vmem>>, vector<8x3xi32>
    %c0_1 = arith.constant 0 : index
    %c0_2 = arith.constant 0 : index
    %1 = vector.load %arg2[%c0_1, %c0_2] : memref<27x8xf32, #tpu.memory_space<vmem>>, vector<27x8xf32>
    %c0_3 = arith.constant 0 : index
    %c0_4 = arith.constant 0 : index
    %2 = vector.load %arg3[%c0_3, %c0_4] : memref<24x128xf32, #tpu.memory_space<vmem>>, vector<24x128xf32>
    %3 = tpu.iota {dimensions = array<i32: 1>} : vector<8x27xi32>
    %cst = arith.constant 0.000000e+00 : f32
    %4 = vector.broadcast %cst : f32 to vector<8x128xf32>
    %5 = vector.extract_strided_slice %2 {offsets = [0, 0], sizes = [8, 128], strides = [1, 1]} : vector<24x128xf32> to vector<8x128xf32>
    %cst_5 = arith.constant dense<0.000000e+00> : vector<27x128xf32>
    %6 = tpu.matmul %1, %5, %cst_5 {dimension_numbers = #tpu.dot_dimension_numbers<[1], [0], [0], [1], [0, 0, 1, 1], [], []>} : vector<27x8xf32>, vector<8x128xf32>, vector<27x128xf32> -> vector<27x128xf32>
    %7 = vector.extract_strided_slice %0 {offsets = [0, 0], sizes = [8, 1], strides = [1, 1]} : vector<8x3xi32> to vector<8x1xi32>
    %8 = vector.broadcast %7 : vector<8x1xi32> to vector<8x27xi32>
    %9 = arith.cmpi eq, %8, %3 : vector<8x27xi32>
    %10 = arith.extui %9 : vector<8x27xi1> to vector<8x27xi32>
    %11 = arith.sitofp %10 : vector<8x27xi32> to vector<8x27xf32>
    %cst_6 = arith.constant dense<0.000000e+00> : vector<8x128xf32>
    %12 = tpu.matmul %11, %6, %cst_6 {dimension_numbers = #tpu.dot_dimension_numbers<[1], [0], [0], [1], [0, 0, 1, 1], [], []>} : vector<8x27xf32>, vector<27x128xf32>, vector<8x128xf32> -> vector<8x128xf32>
    %13 = arith.addf %4, %12 : vector<8x128xf32>
    %14 = vector.extract_strided_slice %2 {offsets = [8, 0], sizes = [8, 128], strides = [1, 1]} : vector<24x128xf32> to vector<8x128xf32>
    %cst_7 = arith.constant dense<0.000000e+00> : vector<27x128xf32>
    %15 = tpu.matmul %1, %14, %cst_7 {dimension_numbers = #tpu.dot_dimension_numbers<[1], [0], [0], [1], [0, 0, 1, 1], [], []>} : vector<27x8xf32>, vector<8x128xf32>, vector<27x128xf32> -> vector<27x128xf32>
    %16 = vector.extract_strided_slice %0 {offsets = [0, 1], sizes = [8, 1], strides = [1, 1]} : vector<8x3xi32> to vector<8x1xi32>
    %17 = vector.broadcast %16 : vector<8x1xi32> to vector<8x27xi32>
    %18 = arith.cmpi eq, %17, %3 : vector<8x27xi32>
    %19 = arith.extui %18 : vector<8x27xi1> to vector<8x27xi32>
    %20 = arith.sitofp %19 : vector<8x27xi32> to vector<8x27xf32>
    %cst_8 = arith.constant dense<0.000000e+00> : vector<8x128xf32>
    %21 = tpu.matmul %20, %15, %cst_8 {dimension_numbers = #tpu.dot_dimension_numbers<[1], [0], [0], [1], [0, 0, 1, 1], [], []>} : vector<8x27xf32>, vector<27x128xf32>, vector<8x128xf32> -> vector<8x128xf32>
    %22 = arith.addf %13, %21 : vector<8x128xf32>
    %23 = vector.extract_strided_slice %2 {offsets = [16, 0], sizes = [8, 128], strides = [1, 1]} : vector<24x128xf32> to vector<8x128xf32>
    %cst_9 = arith.constant dense<0.000000e+00> : vector<27x128xf32>
    %24 = tpu.matmul %1, %23, %cst_9 {dimension_numbers = #tpu.dot_dimension_numbers<[1], [0], [0], [1], [0, 0, 1, 1], [], []>} : vector<27x8xf32>, vector<8x128xf32>, vector<27x128xf32> -> vector<27x128xf32>
    %25 = vector.extract_strided_slice %0 {offsets = [0, 2], sizes = [8, 1], strides = [1, 1]} : vector<8x3xi32> to vector<8x1xi32>
    %26 = vector.broadcast %25 : vector<8x1xi32> to vector<8x27xi32>
    %27 = arith.cmpi eq, %26, %3 : vector<8x27xi32>
    %28 = arith.extui %27 : vector<8x27xi1> to vector<8x27xi32>
    %29 = arith.sitofp %28 : vector<8x27xi32> to vector<8x27xf32>
    %cst_10 = arith.constant dense<0.000000e+00> : vector<8x128xf32>
    %30 = tpu.matmul %29, %24, %cst_10 {dimension_numbers = #tpu.dot_dimension_numbers<[1], [0], [0], [1], [0, 0, 1, 1], [], []>} : vector<8x27xf32>, vector<27x128xf32>, vector<8x128xf32> -> vector<8x128xf32>
    %31 = arith.addf %22, %30 : vector<8x128xf32>
    %c0_11 = arith.constant 0 : index
    %c0_12 = arith.constant 0 : index
    %32 = vector.load %arg4[%c0_11, %c0_12] : memref<1x128xf32, #tpu.memory_space<vmem>>, vector<1x128xf32>
    %33 = vector.broadcast %32 : vector<1x128xf32> to vector<8x128xf32>
    %34 = arith.addf %31, %33 : vector<8x128xf32>
    %35 = math.sin %34 : vector<8x128xf32>
    %c0_13 = arith.constant 0 : index
    %c0_14 = arith.constant 0 : index
    %36 = vector.load %arg5[%c0_13, %c0_14] : memref<128x128xf32, #tpu.memory_space<vmem>>, vector<128x128xf32>
    %cst_15 = arith.constant dense<0.000000e+00> : vector<8x128xf32>
    %37 = tpu.matmul %35, %36, %cst_15 {dimension_numbers = #tpu.dot_dimension_numbers<[1], [0], [0], [1], [0, 0, 1, 1], [], []>} : vector<8x128xf32>, vector<128x128xf32>, vector<8x128xf32> -> vector<8x128xf32>
    %c0_16 = arith.constant 0 : index
    %c0_17 = arith.constant 0 : index
    %38 = vector.load %arg6[%c0_16, %c0_17] : memref<1x128xf32, #tpu.memory_space<vmem>>, vector<1x128xf32>
    %39 = vector.broadcast %38 : vector<1x128xf32> to vector<8x128xf32>
    %40 = arith.addf %37, %39 : vector<8x128xf32>
    %c0_18 = arith.constant 0 : index
    %c0_19 = arith.constant 0 : index
    %41 = vector.load %arg7[%c0_18, %c0_19] : memref<8x128xf32, #tpu.memory_space<vmem>>, vector<8x128xf32>
    tpu.vector_store %arg7[%c0_18, %c0_19], %40 {strides = array<i32>} : memref<8x128xf32, #tpu.memory_space<vmem>>, vector<8x128xf32>,
    return
  }
  func.func @transform_0(%arg0: i32) -> (i32, i32) {
    %c0_i32 = arith.constant 0 : i32
    %c0_i32_0 = arith.constant 0 : i32
    return %arg0, %c0_i32 : i32, i32
  }
  func.func @transform_1(%arg0: i32) -> (i32, i32) {
    %c0_i32 = arith.constant 0 : i32
    %c0_i32_0 = arith.constant 0 : i32
    %c0_i32_1 = arith.constant 0 : i32
    return %c0_i32, %c0_i32_0 : i32, i32
  }
  func.func @transform_2(%arg0: i32) -> (i32, i32) {
    %c0_i32 = arith.constant 0 : i32
    %c0_i32_0 = arith.constant 0 : i32
    %c0_i32_1 = arith.constant 0 : i32
    return %c0_i32, %c0_i32_0 : i32, i32
  }
  func.func @transform_3(%arg0: i32) -> (i32, i32) {
    %c0_i32 = arith.constant 0 : i32
    %c0_i32_0 = arith.constant 0 : i32
    %c0_i32_1 = arith.constant 0 : i32
    return %c0_i32, %c0_i32_0 : i32, i32
  }
  func.func @transform_4(%arg0: i32) -> (i32, i32) {
    %c0_i32 = arith.constant 0 : i32
    %c0_i32_0 = arith.constant 0 : i32
    %c0_i32_1 = arith.constant 0 : i32
    return %c0_i32, %c0_i32_0 : i32, i32
  }
  func.func @transform_5(%arg0: i32) -> (i32, i32) {
    %c0_i32 = arith.constant 0 : i32
    %c0_i32_0 = arith.constant 0 : i32
    %c0_i32_1 = arith.constant 0 : i32
    return %c0_i32, %c0_i32_0 : i32, i32
  }
  func.func @transform_6(%arg0: i32) -> (i32, i32) {
    %c0_i32 = arith.constant 0 : i32
    %c0_i32_0 = arith.constant 0 : i32
    return %arg0, %c0_i32 : i32, i32
  }
}

</mosaic_0001>

<llo_original>
// kernel: tpu_custom_call.1
$region0: #{tpu_custom_call.1}
  #allocation0 [shape = 'u32[]', space=smem, size = 0x4, offset = 0x4, fixed_abs, tag = 'smem constant byte address 0x4 - core index']
  #allocation1 [shape = 'u32[144,128]{1,0:T(1,128)}', space=vmem, size = 0x12000, scoped, tag = 'internal scratch']
  %s0 = inlined_call_operand.vmem [shape: s32[8,3], index: 0, kind: input, shape index: {}]
  %s1 = inlined_call_operand.vmem [shape: f32[27,8], index: 1, kind: input, shape index: {}]
  %s2 = inlined_call_operand.vmem [shape: f32[24,128], index: 2, kind: input, shape index: {}]
  %s3 = inlined_call_operand.vmem [shape: f32[1,128], index: 3, kind: input, shape index: {}]
  %s4 = inlined_call_operand.hbm [shape: f32[128,128], index: 4, kind: input, shape index: {}]
  %s5 = inlined_call_operand.vmem [shape: f32[1,128], index: 5, kind: input, shape index: {}]
  %s6 = inlined_call_operand.hbm [shape: f32[8,128], index: 6, kind: output, shape index: {}]
  %s7 = sld [smem:[#allocation0]]
  $region38: #{tpu_custom_call.1} parent=0
    _
  %s9 = ssub.s32 1, %s7
  %s10 = scalar_select 0, %s9, %s7
  $region1: #{tpu_custom_call.1} parent=0
    #allocation2 [shape = 'u8[65536]{0}', space=vmem, size = 0x10000, scoped, tag = 'input window, operand 4, single buffered']
    #allocation3 [shape = 's32[1]{0}', space=sflag, size = 0x4, scoped, tag = 'scoped memory for tpu_custom_call.1']
    #allocation4 [shape = 's32[1]{0}', space=sflag, size = 0x4, scoped, tag = 'scoped memory for tpu_custom_call.1']
    #allocation5 [shape = 'u8[4096]{0}', space=vmem, size = 0x1000, scoped, tag = 'output window, operand 0, single buffered']
    %11 = vsyncpa [#allocation3], 0
    %12 = vsyncpa [#allocation4], 0
    // Predicated region
    $region2: #{tpu_custom_call.1} parent=1 // pred_check
      _
    $region3: #{tpu_custom_call.1} parent=1 // pred_check_branch
      %14 = sbr.rel (0) target = $region5
    $region4: #{tpu_custom_call.1} parent=1 // pred_region
      _
    $region5: #{tpu_custom_call.1} parent=1 // pred_fallthru
      _
    // Predicated region
    $region6: #{tpu_custom_call.1} parent=1 // pred_check
      _
    $region7: #{tpu_custom_call.1} parent=1 // pred_check_branch
      %16 = sbr.rel (0) target = $region9
    $region8: #{tpu_custom_call.1} parent=1 // pred_region
      _
    $region9: #{tpu_custom_call.1} parent=1 // pred_fallthru
      _
    // Predicated region
    $region10: #{tpu_custom_call.1} parent=1 // pred_check
      _
    $region11: #{tpu_custom_call.1} parent=1 // pred_check_branch
      %18 = sbr.rel (0) target = $region13
    $region12: #{tpu_custom_call.1} parent=1 // pred_region
      _
    $region13: #{tpu_custom_call.1} parent=1 // pred_fallthru
      _
    // Predicated region
    $region14: #{tpu_custom_call.1} parent=1 // pred_check
      _
    $region15: #{tpu_custom_call.1} parent=1 // pred_check_branch
      %20 = sbr.rel (0) target = $region17
    $region16: #{tpu_custom_call.1} parent=1 // pred_region
      _
    $region17: #{tpu_custom_call.1} parent=1 // pred_fallthru
      _
    // Predicated region
    $region18: #{tpu_custom_call.1} parent=1 // pred_check
      _
    $region19: #{tpu_custom_call.1} parent=1 // pred_check_branch
      %22 = sbr.rel (0) target = $region21
    $region20: #{tpu_custom_call.1} parent=1 // pred_region
      %s24 = ssub.s32 2048, 2048
      %25 = vsyncadd [#allocation3], %s24
      %s26 = sshll.u32 [#allocation2], 4
      %s27 = int_to_ptr.vmem [resolvable:$true] %s26
      %32 = dma.hbm_to_vmem [thread:$0]  %s4, 2048, %s27, [#allocation3], 128, 128, 8
    $region21: #{tpu_custom_call.1} parent=1 // pred_fallthru
      _
    // Predicated region
    $region22: #{tpu_custom_call.1} parent=1 // pred_check
      _
    $region23: #{tpu_custom_call.1} parent=1 // pred_check_branch
      %34 = sbr.rel (0) target = $region25
    $region24: #{tpu_custom_call.1} parent=1 // pred_region
      _
    $region25: #{tpu_custom_call.1} parent=1 // pred_fallthru
      _
    // Predicated region
    $region26: #{tpu_custom_call.1} parent=1 // pred_check
      _
    $region27: #{tpu_custom_call.1} parent=1 // pred_check_branch
      %36 = sbr.rel (0) target = $region29
    $region28: #{tpu_custom_call.1} parent=1 // pred_region
      %37 = dma.done [#allocation3], 2048
    $region29: #{tpu_custom_call.1} parent=1 // pred_fallthru
      _
    %v38 = vld [vmem:[%s0] sm:$0xff]
    %v39 = vld [vmem:[%s1] sm:$0xff]
    %v40 = vld [vmem:[%s1 + $0x8] sm:$0xff]
    %v41 = vld [vmem:[%s1 + $0x10] sm:$0xff]
    %v42 = vld [vmem:[%s1 + $0x18] sm:$0x7]
    %v43 = vld [vmem:[%s2] sm:$0xff]
    %v44 = vld [vmem:[%s2 + $0x8] sm:$0xff]
    %v45 = vld [vmem:[%s2 + $0x10] sm:$0xff]
    %v46 = vlaneseq
    %v47 = vand.u32 %v46, 127
    %vm48 = vcmask 64512
    %v50 = vsel %vm48, %v39, 0
    %v53 = vsel %vm48, %v40, 0
    %v56 = vsel %vm48, %v41, 0
    %v59 = vsel %vm48, %v42, 0
    %61 = vmatprep.subr.mxu0 0.0
    %62 = vmatpush1.msra.mxu0 %v43
    %63 = vmatprep.subr.mxu0 0.0
    %64 = vmatpush1.msra.mxu0 0.0
    %65 = vmatprep.subr.mxu0 0.0
    %66 = vmatpush1.msra.mxu0 0.0
    %67 = vmatprep.subr.mxu0 0.0
    %68 = vmatpush1.msra.mxu0 0.0
    %69 = vmatprep.subr.mxu0 0.0
    %70 = vmatpush1.msra.mxu0 0.0
    %71 = vmatprep.subr.mxu0 0.0
    %72 = vmatpush1.msra.mxu0 0.0
    %73 = vmatprep.subr.mxu0 0.0
    %74 = vmatpush1.msra.mxu0 0.0
    %75 = vmatprep.subr.mxu0 0.0
    %76 = vmatpush1.msra.mxu0 0.0
    %77 = vmatprep.subr.mxu0 0.0
    %78 = vmatpush1.msra.mxu0 0.0
    %79 = vmatprep.subr.mxu0 0.0
    %80 = vmatpush1.msra.mxu0 0.0
    %81 = vmatprep.subr.mxu0 0.0
    %82 = vmatpush1.msra.mxu0 0.0
    %83 = vmatprep.subr.mxu0 0.0
    %84 = vmatpush1.msra.mxu0 0.0
    %85 = vmatprep.subr.mxu0 0.0
    %86 = vmatpush1.msra.mxu0 0.0
    %87 = vmatprep.subr.mxu0 0.0
    %88 = vmatpush1.msra.mxu0 0.0
    %89 = vmatprep.subr.mxu0 0.0
    %90 = vmatpush1.msra.mxu0 0.0
    %91 = vmatprep.subr.mxu0 0.0
    %92 = vmatpush1.msra.mxu0 0.0
    %93 = vmatprep.subr.mxu0 0.0
    %94 = vmatpush1.msra.mxu0 0.0
    %95 = vmatprep.subr.mxu0 0.0
    %96 = vmatpush1.msra.mxu0 0.0
    %97 = vmatprep.subr.mxu0 0.0
    %98 = vmatpush1.msra.mxu0 0.0
    %99 = vmatprep.subr.mxu0 0.0
    %100 = vmatpush1.msra.mxu0 0.0
    %101 = vmatprep.subr.mxu0 0.0
    %102 = vmatpush1.msra.mxu0 0.0
    %103 = vmatprep.subr.mxu0 0.0
    %104 = vmatpush1.msra.mxu0 0.0
    %105 = vmatprep.subr.mxu0 0.0
    %106 = vmatpush1.msra.mxu0 0.0
    %107 = vmatprep.subr.mxu0 0.0
    %108 = vmatpush1.msra.mxu0 0.0
    %109 = vmatprep.subr.mxu0 0.0
    %110 = vmatpush1.msra.mxu0 0.0
    %111 = vmatprep.subr.mxu0 0.0
    %112 = vmatpush1.msra.mxu0 0.0
    %113 = vmatprep.subr.mxu0 0.0
    %114 = vmatpush1.msra.mxu0 0.0
    %115 = vmatprep.subr.mxu0 0.0
    %116 = vmatpush1.msra.mxu0 0.0
    %117 = vmatprep.subr.mxu0 0.0
    %118 = vmatpush1.msra.mxu0 0.0
    %119 = vmatprep.subr.mxu0 0.0
    %120 = vmatpush1.msra.mxu0 0.0
    %121 = vmatprep.subr.mxu0 0.0
    %122 = vmatpush1.msra.mxu0 0.0
    %123 = vmatprep.subr.mxu0 0.0
    %124 = vmatpush1.msra.mxu0 0.0
    %125 = vmatprep.mubr.f32.mxu0 0.0
    %126 = vmatmul.mubr.f32.gmra.mrb[0].mxu0 %v50
    %v127 = vpop.f32.mrb[0].mxu0
    %v128 = vadd.f32 0.0, %v127
    %v129 = vpop.f32.mrb[0].mxu0
    %130 = vmatprep.mubr.f32.mxu0 0.0
    %131 = vmatmul.mubr.f32.gmra.mrb[0].mxu0 %v53
    %v132 = vpop.f32.mrb[0].mxu0
    %v133 = vadd.f32 0.0, %v132
    %v134 = vpop.f32.mrb[0].mxu0
    %135 = vmatprep.mubr.f32.mxu0 0.0
    %136 = vmatmul.mubr.f32.gmra.mrb[0].mxu0 %v56
    %v137 = vpop.f32.mrb[0].mxu0
    %v138 = vadd.f32 0.0, %v137
    %v139 = vpop.f32.mrb[0].mxu0
    %140 = vmatprep.mubr.f32.mxu0 0.0
    %141 = vmatmul.mubr.f32.gmra.mrb[0].mxu0 %v59
    %v142 = vpop.f32.mrb[0].mxu0
    %v143 = vadd.f32 0.0, %v142
    %v144 = vpop.f32.mrb[0].mxu0
    %145 = vdwg.mxu0
    %146 = vset.pattern.permute.xlu0 0
    %147 = vperm.xlu0 %146, %v38
    %v148 = vpop.permute.xlu0 %147
    %vm149 = vcmp.eq.s32.totalorder %v148, %v47
    %v150 = vsel %vm149, 1, 0
    %v151 = vcvt.s32.f32 %v150
    %152 = vmatprep.subr.mxu0 0.0
    %153 = vmatpush1.msra.mxu0 %v44
    %154 = vmatprep.subr.mxu0 0.0
    %155 = vmatpush1.msra.mxu0 0.0
    %156 = vmatprep.subr.mxu0 0.0
    %157 = vmatpush1.msra.mxu0 0.0
    %158 = vmatprep.subr.mxu0 0.0
    %159 = vmatpush1.msra.mxu0 0.0
    %160 = vmatprep.subr.mxu0 0.0
    %161 = vmatpush1.msra.mxu0 0.0
    %162 = vmatprep.subr.mxu0 0.0
    %163 = vmatpush1.msra.mxu0 0.0
    %164 = vmatprep.subr.mxu0 0.0
    %165 = vmatpush1.msra.mxu0 0.0
    %166 = vmatprep.subr.mxu0 0.0
    %167 = vmatpush1.msra.mxu0 0.0
    %168 = vmatprep.subr.mxu0 0.0
    %169 = vmatpush1.msra.mxu0 0.0
    %170 = vmatprep.subr.mxu0 0.0
    %171 = vmatpush1.msra.mxu0 0.0
    %172 = vmatprep.subr.mxu0 0.0
    %173 = vmatpush1.msra.mxu0 0.0
    %174 = vmatprep.subr.mxu0 0.0
    %175 = vmatpush1.msra.mxu0 0.0
    %176 = vmatprep.subr.mxu0 0.0
    %177 = vmatpush1.msra.mxu0 0.0
    %178 = vmatprep.subr.mxu0 0.0
    %179 = vmatpush1.msra.mxu0 0.0
    %180 = vmatprep.subr.mxu0 0.0
    %181 = vmatpush1.msra.mxu0 0.0
    %182 = vmatprep.subr.mxu0 0.0
    %183 = vmatpush1.msra.mxu0 0.0
    %184 = vmatprep.subr.mxu0 0.0
    %185 = vmatpush1.msra.mxu0 0.0
    %186 = vmatprep.subr.mxu0 0.0
    %187 = vmatpush1.msra.mxu0 0.0
    %188 = vmatprep.subr.mxu0 0.0
    %189 = vmatpush1.msra.mxu0 0.0
    %190 = vmatprep.subr.mxu0 0.0
    %191 = vmatpush1.msra.mxu0 0.0
    %192 = vmatprep.subr.mxu0 0.0
    %193 = vmatpush1.msra.mxu0 0.0
    %194 = vmatprep.subr.mxu0 0.0
    %195 = vmatpush1.msra.mxu0 0.0
    %196 = vmatprep.subr.mxu0 0.0
    %197 = vmatpush1.msra.mxu0 0.0
    %198 = vmatprep.subr.mxu0 0.0
    %199 = vmatpush1.msra.mxu0 0.0
    %200 = vmatprep.subr.mxu0 0.0
    %201 = vmatpush1.msra.mxu0 0.0
    %202 = vmatprep.subr.mxu0 0.0
    %203 = vmatpush1.msra.mxu0 0.0
    %204 = vmatprep.subr.mxu0 0.0
    %205 = vmatpush1.msra.mxu0 0.0
    %206 = vmatprep.subr.mxu0 0.0
    %207 = vmatpush1.msra.mxu0 0.0
    %208 = vmatprep.subr.mxu0 0.0
    %209 = vmatpush1.msra.mxu0 0.0
    %210 = vmatprep.subr.mxu0 0.0
    %211 = vmatpush1.msra.mxu0 0.0
    %212 = vmatprep.subr.mxu0 0.0
    %213 = vmatpush1.msra.mxu0 0.0
    %214 = vmatprep.subr.mxu0 0.0
    %215 = vmatpush1.msra.mxu0 0.0
    %216 = vmatprep.mubr.f32.mxu0 0.0
    %217 = vmatmul.mubr.f32.gmra.mrb[0].mxu0 %v50
    %v218 = vpop.f32.mrb[0].mxu0
    %v219 = vadd.f32 0.0, %v218
    %v220 = vpop.f32.mrb[0].mxu0
    %221 = vmatprep.mubr.f32.mxu0 0.0
    %222 = vmatmul.mubr.f32.gmra.mrb[0].mxu0 %v53
    %v223 = vpop.f32.mrb[0].mxu0
    %v224 = vadd.f32 0.0, %v223
    %v225 = vpop.f32.mrb[0].mxu0
    %226 = vmatprep.mubr.f32.mxu0 0.0
    %227 = vmatmul.mubr.f32.gmra.mrb[0].mxu0 %v56
    %v228 = vpop.f32.mrb[0].mxu0
    %v229 = vadd.f32 0.0, %v228
    %v230 = vpop.f32.mrb[0].mxu0
    %231 = vmatprep.mubr.f32.mxu0 0.0
    %232 = vmatmul.mubr.f32.gmra.mrb[0].mxu0 %v59
    %v233 = vpop.f32.mrb[0].mxu0
    %v234 = vadd.f32 0.0, %v233
    %v235 = vpop.f32.mrb[0].mxu0
    %236 = vdwg.mxu0
    %237 = vset.pattern.permute.xlu0 1
    %238 = vperm.xlu0 %237, %v38
    %v239 = vpop.permute.xlu0 %238
    %vm240 = vcmp.eq.s32.totalorder %v239, %v47
    %v241 = vsel %vm240, 1, 0
    %v242 = vcvt.s32.f32 %v241
    %vm243 = vcmask 220160
    %v245 = vsel %vm243, %v242, 0
    %vm247 = vcmask 1042432
    %v249 = vsel %vm247, %v234, 0
    %251 = vmatprep.subr.mxu0 0.0
    %252 = vmatpush1.msra.mxu0 %v219
    %253 = vmatprep.subr.mxu0 0.0
    %254 = vmatpush1.msra.mxu0 %v224
    %255 = vmatprep.subr.mxu0 0.0
    %256 = vmatpush1.msra.mxu0 %v229
    %257 = vmatprep.subr.mxu0 0.0
    %258 = vmatpush1.msra.mxu0 %v249
    %259 = vmatprep.subr.mxu0 0.0
    %260 = vmatpush1.msra.mxu0 0.0
    %261 = vmatprep.subr.mxu0 0.0
    %262 = vmatpush1.msra.mxu0 0.0
    %263 = vmatprep.subr.mxu0 0.0
    %264 = vmatpush1.msra.mxu0 0.0
    %265 = vmatprep.subr.mxu0 0.0
    %266 = vmatpush1.msra.mxu0 0.0
    %267 = vmatprep.subr.mxu0 0.0
    %268 = vmatpush1.msra.mxu0 0.0
    %269 = vmatprep.subr.mxu0 0.0
    %270 = vmatpush1.msra.mxu0 0.0
    %271 = vmatprep.subr.mxu0 0.0
    %272 = vmatpush1.msra.mxu0 0.0
    %273 = vmatprep.subr.mxu0 0.0
    %274 = vmatpush1.msra.mxu0 0.0
    %275 = vmatprep.subr.mxu0 0.0
    %276 = vmatpush1.msra.mxu0 0.0
    %277 = vmatprep.subr.mxu0 0.0
    %278 = vmatpush1.msra.mxu0 0.0
    %279 = vmatprep.subr.mxu0 0.0
    %280 = vmatpush1.msra.mxu0 0.0
    %281 = vmatprep.subr.mxu0 0.0
    %282 = vmatpush1.msra.mxu0 0.0
    %283 = vmatprep.subr.mxu0 0.0
    %284 = vmatpush1.msra.mxu0 0.0
    %285 = vmatprep.subr.mxu0 0.0
    %286 = vmatpush1.msra.mxu0 0.0
    %287 = vmatprep.subr.mxu0 0.0
    %288 = vmatpush1.msra.mxu0 0.0
    %289 = vmatprep.subr.mxu0 0.0
    %290 = vmatpush1.msra.mxu0 0.0
    %291 = vmatprep.subr.mxu0 0.0
    %292 = vmatpush1.msra.mxu0 0.0
    %293 = vmatprep.subr.mxu0 0.0
    %294 = vmatpush1.msra.mxu0 0.0
    %295 = vmatprep.subr.mxu0 0.0
    %296 = vmatpush1.msra.mxu0 0.0
    %297 = vmatprep.subr.mxu0 0.0
    %298 = vmatpush1.msra.mxu0 0.0
    %299 = vmatprep.subr.mxu0 0.0
    %300 = vmatpush1.msra.mxu0 0.0
    %301 = vmatprep.subr.mxu0 0.0
    %302 = vmatpush1.msra.mxu0 0.0
    %303 = vmatprep.subr.mxu0 0.0
    %304 = vmatpush1.msra.mxu0 0.0
    %305 = vmatprep.subr.mxu0 0.0
    %306 = vmatpush1.msra.mxu0 0.0
    %307 = vmatprep.subr.mxu0 0.0
    %308 = vmatpush1.msra.mxu0 0.0
    %309 = vmatprep.subr.mxu0 0.0
    %310 = vmatpush1.msra.mxu0 0.0
    %311 = vmatprep.subr.mxu0 0.0
    %312 = vmatpush1.msra.mxu0 0.0
    %313 = vmatprep.subr.mxu0 0.0
    %314 = vmatpush1.msra.mxu0 0.0
    %315 = vmatprep.mubr.f32.mxu0 0.0
    %316 = vmatmul.mubr.f32.gmra.mrb[0].mxu0 %v245
    %v317 = vpop.f32.mrb[0].mxu0
    %v318 = vadd.f32 0.0, %v317
    %v319 = vpop.f32.mrb[0].mxu0
    %320 = vdwg.mxu0
    %v322 = vsel %vm243, %v151, 0
    %v325 = vsel %vm247, %v143, 0
    %327 = vmatprep.subr.mxu0 0.0
    %328 = vmatpush1.msra.mxu0 %v128
    %329 = vmatprep.subr.mxu0 0.0
    %330 = vmatpush1.msra.mxu0 %v133
    %331 = vmatprep.subr.mxu0 0.0
    %332 = vmatpush1.msra.mxu0 %v138
    %333 = vmatprep.subr.mxu0 0.0
    %334 = vmatpush1.msra.mxu0 %v325
    %335 = vmatprep.subr.mxu0 0.0
    %336 = vmatpush1.msra.mxu0 0.0
    %337 = vmatprep.subr.mxu0 0.0
    %338 = vmatpush1.msra.mxu0 0.0
    %339 = vmatprep.subr.mxu0 0.0
    %340 = vmatpush1.msra.mxu0 0.0
    %341 = vmatprep.subr.mxu0 0.0
    %342 = vmatpush1.msra.mxu0 0.0
    %343 = vmatprep.subr.mxu0 0.0
    %344 = vmatpush1.msra.mxu0 0.0
    %345 = vmatprep.subr.mxu0 0.0
    %346 = vmatpush1.msra.mxu0 0.0
    %347 = vmatprep.subr.mxu0 0.0
    %348 = vmatpush1.msra.mxu0 0.0
    %349 = vmatprep.subr.mxu0 0.0
    %350 = vmatpush1.msra.mxu0 0.0
    %351 = vmatprep.subr.mxu0 0.0
    %352 = vmatpush1.msra.mxu0 0.0
    %353 = vmatprep.subr.mxu0 0.0
    %354 = vmatpush1.msra.mxu0 0.0
    %355 = vmatprep.subr.mxu0 0.0
    %356 = vmatpush1.msra.mxu0 0.0
    %357 = vmatprep.subr.mxu0 0.0
    %358 = vmatpush1.msra.mxu0 0.0
    %359 = vmatprep.subr.mxu0 0.0
    %360 = vmatpush1.msra.mxu0 0.0
    %361 = vmatprep.subr.mxu0 0.0
    %362 = vmatpush1.msra.mxu0 0.0
    %363 = vmatprep.subr.mxu0 0.0
    %364 = vmatpush1.msra.mxu0 0.0
    %365 = vmatprep.subr.mxu0 0.0
    %366 = vmatpush1.msra.mxu0 0.0
    %367 = vmatprep.subr.mxu0 0.0
    %368 = vmatpush1.msra.mxu0 0.0
    %369 = vmatprep.subr.mxu0 0.0
    %370 = vmatpush1.msra.mxu0 0.0
    %371 = vmatprep.subr.mxu0 0.0
    %372 = vmatpush1.msra.mxu0 0.0
    %373 = vmatprep.subr.mxu0 0.0
    %374 = vmatpush1.msra.mxu0 0.0
    %375 = vmatprep.subr.mxu0 0.0
    %376 = vmatpush1.msra.mxu0 0.0
    %377 = vmatprep.subr.mxu0 0.0
    %378 = vmatpush1.msra.mxu0 0.0
    %379 = vmatprep.subr.mxu0 0.0
    %380 = vmatpush1.msra.mxu0 0.0
    %381 = vmatprep.subr.mxu0 0.0
    %382 = vmatpush1.msra.mxu0 0.0
    %383 = vmatprep.subr.mxu0 0.0
    %384 = vmatpush1.msra.mxu0 0.0
    %385 = vmatprep.subr.mxu0 0.0
    %386 = vmatpush1.msra.mxu0 0.0
    %387 = vmatprep.subr.mxu0 0.0
    %388 = vmatpush1.msra.mxu0 0.0
    %389 = vmatprep.subr.mxu0 0.0
    %390 = vmatpush1.msra.mxu0 0.0
    %391 = vmatprep.mubr.f32.mxu0 0.0
    %392 = vmatmul.mubr.f32.gmra.mrb[0].mxu0 %v322
    %v393 = vpop.f32.mrb[0].mxu0
    %v394 = vadd.f32 %v318, %v393
    %v395 = vpop.f32.mrb[0].mxu0
    %396 = vdwg.mxu0
    %397 = vmatprep.subr.mxu0 0.0
    %398 = vmatpush1.msra.mxu0 %v45
    %399 = vmatprep.subr.mxu0 0.0
    %400 = vmatpush1.msra.mxu0 0.0
    %401 = vmatprep.subr.mxu0 0.0
    %402 = vmatpush1.msra.mxu0 0.0
    %403 = vmatprep.subr.mxu0 0.0
    %404 = vmatpush1.msra.mxu0 0.0
    %405 = vmatprep.subr.mxu0 0.0
    %406 = vmatpush1.msra.mxu0 0.0
    %407 = vmatprep.subr.mxu0 0.0
    %408 = vmatpush1.msra.mxu0 0.0
    %409 = vmatprep.subr.mxu0 0.0
    %410 = vmatpush1.msra.mxu0 0.0
    %411 = vmatprep.subr.mxu0 0.0
    %412 = vmatpush1.msra.mxu0 0.0
    %413 = vmatprep.subr.mxu0 0.0
    %414 = vmatpush1.msra.mxu0 0.0
    %415 = vmatprep.subr.mxu0 0.0
    %416 = vmatpush1.msra.mxu0 0.0
    %417 = vmatprep.subr.mxu0 0.0
    %418 = vmatpush1.msra.mxu0 0.0
    %419 = vmatprep.subr.mxu0 0.0
    %420 = vmatpush1.msra.mxu0 0.0
    %421 = vmatprep.subr.mxu0 0.0
    %422 = vmatpush1.msra.mxu0 0.0
    %423 = vmatprep.subr.mxu0 0.0
    %424 = vmatpush1.msra.mxu0 0.0
    %425 = vmatprep.subr.mxu0 0.0
    %426 = vmatpush1.msra.mxu0 0.0
    %427 = vmatprep.subr.mxu0 0.0
    %428 = vmatpush1.msra.mxu0 0.0
    %429 = vmatprep.subr.mxu0 0.0
    %430 = vmatpush1.msra.mxu0 0.0
    %431 = vmatprep.subr.mxu0 0.0
    %432 = vmatpush1.msra.mxu0 0.0
    %433 = vmatprep.subr.mxu0 0.0
    %434 = vmatpush1.msra.mxu0 0.0
    %435 = vmatprep.subr.mxu0 0.0
    %436 = vmatpush1.msra.mxu0 0.0
    %437 = vmatprep.subr.mxu0 0.0
    %438 = vmatpush1.msra.mxu0 0.0
    %439 = vmatprep.subr.mxu0 0.0
    %440 = vmatpush1.msra.mxu0 0.0
    %441 = vmatprep.subr.mxu0 0.0
    %442 = vmatpush1.msra.mxu0 0.0
    %443 = vmatprep.subr.mxu0 0.0
    %444 = vmatpush1.msra.mxu0 0.0
    %445 = vmatprep.subr.mxu0 0.0
    %446 = vmatpush1.msra.mxu0 0.0
    %447 = vmatprep.subr.mxu0 0.0
    %448 = vmatpush1.msra.mxu0 0.0
    %449 = vmatprep.subr.mxu0 0.0
    %450 = vmatpush1.msra.mxu0 0.0
    %451 = vmatprep.subr.mxu0 0.0
    %452 = vmatpush1.msra.mxu0 0.0
    %453 = vmatprep.subr.mxu0 0.0
    %454 = vmatpush1.msra.mxu0 0.0
    %455 = vmatprep.subr.mxu0 0.0
    %456 = vmatpush1.msra.mxu0 0.0
    %457 = vmatprep.subr.mxu0 0.0
    %458 = vmatpush1.msra.mxu0 0.0
    %459 = vmatprep.subr.mxu0 0.0
    %460 = vmatpush1.msra.mxu0 0.0
    %461 = vmatprep.mubr.f32.mxu0 0.0
    %462 = vmatmul.mubr.f32.gmra.mrb[0].mxu0 %v50
    %v463 = vpop.f32.mrb[0].mxu0
    %v464 = vadd.f32 0.0, %v463
    %v465 = vpop.f32.mrb[0].mxu0
    %466 = vmatprep.mubr.f32.mxu0 0.0
    %467 = vmatmul.mubr.f32.gmra.mrb[0].mxu0 %v53
    %v468 = vpop.f32.mrb[0].mxu0
    %v469 = vadd.f32 0.0, %v468
    %v470 = vpop.f32.mrb[0].mxu0
    %471 = vmatprep.mubr.f32.mxu0 0.0
    %472 = vmatmul.mubr.f32.gmra.mrb[0].mxu0 %v56
    %v473 = vpop.f32.mrb[0].mxu0
    %v474 = vadd.f32 0.0, %v473
    %v475 = vpop.f32.mrb[0].mxu0
    %476 = vmatprep.mubr.f32.mxu0 0.0
    %477 = vmatmul.mubr.f32.gmra.mrb[0].mxu0 %v59
    %v478 = vpop.f32.mrb[0].mxu0
    %v479 = vadd.f32 0.0, %v478
    %v480 = vpop.f32.mrb[0].mxu0
    %481 = vdwg.mxu0
    %482 = vset.pattern.permute.xlu0 2
    %483 = vperm.xlu0 %482, %v38
    %v484 = vpop.permute.xlu0 %483
    %vm485 = vcmp.eq.s32.totalorder %v484, %v47
    %v486 = vsel %vm485, 1, 0
    %v487 = vcvt.s32.f32 %v486
    %v489 = vsel %vm243, %v487, 0
    %v492 = vsel %vm247, %v479, 0
    %494 = vmatprep.subr.mxu0 0.0
    %495 = vmatpush1.msra.mxu0 %v464
    %496 = vmatprep.subr.mxu0 0.0
    %497 = vmatpush1.msra.mxu0 %v469
    %498 = vmatprep.subr.mxu0 0.0
    %499 = vmatpush1.msra.mxu0 %v474
    %500 = vmatprep.subr.mxu0 0.0
    %501 = vmatpush1.msra.mxu0 %v492
    %502 = vmatprep.subr.mxu0 0.0
    %503 = vmatpush1.msra.mxu0 0.0
    %504 = vmatprep.subr.mxu0 0.0
    %505 = vmatpush1.msra.mxu0 0.0
    %506 = vmatprep.subr.mxu0 0.0
    %507 = vmatpush1.msra.mxu0 0.0
    %508 = vmatprep.subr.mxu0 0.0
    %509 = vmatpush1.msra.mxu0 0.0
    %510 = vmatprep.subr.mxu0 0.0
    %511 = vmatpush1.msra.mxu0 0.0
    %512 = vmatprep.subr.mxu0 0.0
    %513 = vmatpush1.msra.mxu0 0.0
    %514 = vmatprep.subr.mxu0 0.0
    %515 = vmatpush1.msra.mxu0 0.0
    %516 = vmatprep.subr.mxu0 0.0
    %517 = vmatpush1.msra.mxu0 0.0
    %518 = vmatprep.subr.mxu0 0.0
    %519 = vmatpush1.msra.mxu0 0.0
    %520 = vmatprep.subr.mxu0 0.0
    %521 = vmatpush1.msra.mxu0 0.0
    %522 = vmatprep.subr.mxu0 0.0
    %523 = vmatpush1.msra.mxu0 0.0
    %524 = vmatprep.subr.mxu0 0.0
    %525 = vmatpush1.msra.mxu0 0.0
    %526 = vmatprep.subr.mxu0 0.0
    %527 = vmatpush1.msra.mxu0 0.0
    %528 = vmatprep.subr.mxu0 0.0
    %529 = vmatpush1.msra.mxu0 0.0
    %530 = vmatprep.subr.mxu0 0.0
    %531 = vmatpush1.msra.mxu0 0.0
    %532 = vmatprep.subr.mxu0 0.0
    %533 = vmatpush1.msra.mxu0 0.0
    %534 = vmatprep.subr.mxu0 0.0
    %535 = vmatpush1.msra.mxu0 0.0
    %536 = vmatprep.subr.mxu0 0.0
    %537 = vmatpush1.msra.mxu0 0.0
    %538 = vmatprep.subr.mxu0 0.0
    %539 = vmatpush1.msra.mxu0 0.0
    %540 = vmatprep.subr.mxu0 0.0
    %541 = vmatpush1.msra.mxu0 0.0
    %542 = vmatprep.subr.mxu0 0.0
    %543 = vmatpush1.msra.mxu0 0.0
    %544 = vmatprep.subr.mxu0 0.0
    %545 = vmatpush1.msra.mxu0 0.0
    %546 = vmatprep.subr.mxu0 0.0
    %547 = vmatpush1.msra.mxu0 0.0
    %548 = vmatprep.subr.mxu0 0.0
    %549 = vmatpush1.msra.mxu0 0.0
    %550 = vmatprep.subr.mxu0 0.0
    %551 = vmatpush1.msra.mxu0 0.0
    %552 = vmatprep.subr.mxu0 0.0
    %553 = vmatpush1.msra.mxu0 0.0
    %554 = vmatprep.subr.mxu0 0.0
    %555 = vmatpush1.msra.mxu0 0.0
    %556 = vmatprep.subr.mxu0 0.0
    %557 = vmatpush1.msra.mxu0 0.0
    %558 = vmatprep.mubr.f32.mxu0 0.0
    %559 = vmatmul.mubr.f32.gmra.mrb[0].mxu0 %v489
    %v560 = vpop.f32.mrb[0].mxu0
    %v561 = vadd.f32 0.0, %v560
    %v562 = vpop.f32.mrb[0].mxu0
    %563 = vdwg.mxu0
    %v564 = vadd.f32 %v394, %v561
    %v565 = vld [vmem:[%s3] sm:$0x1]
    %v567 = vlaneseq
    %v568 = vshrl.u32 %v567, 7
    %v569 = vsub.s32 0, %v568
    %v570 = vrot.slane %v565, %v569
    %v572 = vadd.f32 %v564, %v570
    %v573 = vand.u32 2147483647, %v572
    %vm574 = vcmp.le.f32.partialorder %v573, 0.7853982
    %vm575 = vcmp.lt.s32.totalorder %v572, 0
    %v576 = vand.u32 %v572, 2139095040
    %v577 = vshrl.u32 %v576, 23
    %v578 = vsub.s32 %v577, 127
    %v579 = vand.u32 2147483647, %v572
    %v580 = vand.u32 %v579, 8388607
    %v581 = vor.u32 %v580, 8388608
    %v582 = vsub.s32 0, %v581
    %v583 = vadd.s32 %v578, 1
    %vm584 = vcmp.gt.s32.totalorder %v583, 0
    %v585 = vsel %vm584, %v583, 0
    %v586 = vshrl.u32 %v585, 5
    %v587 = vand.u32 %v585, 31
    %v588 = vsub.s32 32, %v587
    %v589 = vshrl.u32 683565275, %v588
    %v590 = vshll.u32 683565275, %v587
    %v591 = vshrl.u32 2475754826, %v588
    %v592 = vor.u32 %v590, %v591
    %v593 = vshll.u32 2475754826, %v587
    %v594 = vshrl.u32 2131351028, %v588
    %v595 = vor.u32 %v593, %v594
    %v596 = vshll.u32 2131351028, %v587
    %v597 = vshrl.u32 2102212464, %v588
    %v598 = vor.u32 %v596, %v597
    %v599 = vshll.u32 2102212464, %v587
    %v600 = vshrl.u32 920167782, %v588
    %v601 = vor.u32 %v599, %v600
    %v602 = vshll.u32 920167782, %v587
    %v603 = vshrl.u32 1326507024, %v588
    %v604 = vor.u32 %v602, %v603
    %vm605 = vcmp.lt.s32.totalorder %v586, 1
    %vm606 = vcmp.lt.s32.totalorder %v586, 2
    %vm607 = vcmp.lt.s32.totalorder %v586, 3
    %vm608 = vcmp.lt.s32.totalorder %v586, 4
    %v609 = vsel %vm605, %v589, %v592
    %v610 = vsel %vm608, %v598, 2102212464
    %v611 = vsel %vm607, %v595, %v610
    %v612 = vsel %vm606, %v609, %v611
    %v613 = vsel %vm605, %v592, %v595
    %v614 = vsel %vm608, %v601, 920167782
    %v615 = vsel %vm607, %v598, %v614
    %v616 = vsel %vm606, %v613, %v615
    %v617 = vsel %vm605, %v595, %v598
    %v618 = vsel %vm608, %v604, 1326507024
    %v619 = vsel %vm607, %v601, %v618
    %v620 = vsel %vm606, %v617, %v619
    %v621 = vshll.u32 %v581, 8
    %v622 = vmul.u32.u64.compose %v621, %v620
    %v623 = vextract.low.u32 %v622
    %v624 = vextract.high.u32 %v622
    %v625 = vmul.u32.u64.compose %v621, %v616
    %v626 = vextract.low.u32 %v625
    %v627 = vextract.high.u32 %v625
    %v628 = vmul.u32 %v621, %v612
    %v629 = vadd.s32 %v624, %v626
    %vm630 = vc.u32 %v624, %v626
    %v631 = vadd.s32 %v627, 1
    %v632 = vsel %vm630, %v631, %v627
    %v633 = vadd.s32 %v628, %v632
    %v634 = vadd.s32 %v633, 536870912
    %v635 = vshrl.u32 %v634, 30
    %v636 = vshll.u32 %v635, 30
    %v637 = vsub.s32 %v633, %v636
    %vm638 = vcmp.lt.s32.totalorder %v637, 0
    %v639 = vsub.s32 0, %v637
    %v640 = vsel %vm638, %v639, %v637
    %v641 = vclz %v640
    %v642 = vsub.s32 %v641, 2
    %vm643 = vcmp.gt.s32.totalorder 0, %v642
    %v644 = vsel %vm643, 0, %v642
    %v645 = vsub.s32 32, %v644
    %v646 = vshll.u32 %v637, %v644
    %v647 = vshrl.u32 %v629, %v645
    %v648 = vor.u32 %v646, %v647
    %v649 = vsub.s32 4294967266, %v644
    %v650 = vadd.s32 %v649, 127
    %v651 = vshll.u32 %v650, 23
    %v652 = vor.u32 4788187, %v651
    %v653 = vand.u32 2147483647, %v652
    %v655 = vcvt.s32.f32 %v648
    %v656 = vmul.f32 %v655, %v653
    %v657 = vxor.u32 %v656, 2147483648
    %v658 = vsel %vm575, %v657, %v656
    %v659 = vsub.s32 4, %v635
    %v660 = vsel %vm575, %v659, %v635
    %v661 = vsel %vm574, %v572, %v658
    %v662 = vsel %vm574, 0, %v660
    %v663 = vcosq.f32.pop %v661
    %v664 = vsinq.f32.pop %v661
    %vm665 = vweird.f32 %v572
    %v666 = vadd.s32 %v662, 3
    %v667 = vand.u32 %v666, 3
    %vm668 = vcmp.lt.s32.totalorder %v667, 2
    %vm669 = vcmp.eq.s32.totalorder %v667, 0
    %v670 = vxor.u32 %v664, 2147483648
    %v671 = vsel %vm669, %v663, %v670
    %vm672 = vcmp.eq.s32.totalorder %v667, 2
    %v673 = vxor.u32 %v663, 2147483648
    %v674 = vsel %vm672, %v673, %v664
    %v675 = vsel %vm668, %v671, %v674
    %v676 = vsel %vm665, nan, %v675
    %v677 = vld [vmem:[#allocation2] sm:$0xff]
    %v678 = vld [vmem:[#allocation2 + $0x8] sm:$0xff]
    %v679 = vld [vmem:[#allocation2 + $0x10] sm:$0xff]
    %v680 = vld [vmem:[#allocation2 + $0x18] sm:$0xff]
    %v681 = vld [vmem:[#allocation2 + $0x20] sm:$0xff]
    %v682 = vld [vmem:[#allocation2 + $0x28] sm:$0xff]
    %v683 = vld [vmem:[#allocation2 + $0x30] sm:$0xff]
    %v684 = vld [vmem:[#allocation2 + $0x38] sm:$0xff]
    %v685 = vld [vmem:[#allocation2 + $0x40] sm:$0xff]
    %v686 = vld [vmem:[#allocation2 + $0x48] sm:$0xff]
    %v687 = vld [vmem:[#allocation2 + $0x50] sm:$0xff]
    %v688 = vld [vmem:[#allocation2 + $0x58] sm:$0xff]
    %v689 = vld [vmem:[#allocation2 + $0x60] sm:$0xff]
    %v690 = vld [vmem:[#allocation2 + $0x68] sm:$0xff]
    %v691 = vld [vmem:[#allocation2 + $0x70] sm:$0xff]
    %v692 = vld [vmem:[#allocation2 + $0x78] sm:$0xff]
    %v693 = vld [vmem:[%s5] sm:$0x1]
    %v695 = vlaneseq
    %v696 = vshrl.u32 %v695, 7
    %v697 = vsub.s32 0, %v696
    %v698 = vrot.slane %v693, %v697
    %700 = vmatprep.subr.mxu0 0.0
    %701 = vmatpush1.msra.mxu0 %v677
    %702 = vmatprep.subr.mxu0 0.0
    %703 = vmatpush1.msra.mxu0 %v678
    %704 = vmatprep.subr.mxu0 0.0
    %705 = vmatpush1.msra.mxu0 %v679
    %706 = vmatprep.subr.mxu0 0.0
    %707 = vmatpush1.msra.mxu0 %v680
    %708 = vmatprep.subr.mxu0 0.0
    %709 = vmatpush1.msra.mxu0 %v681
    %710 = vmatprep.subr.mxu0 0.0
    %711 = vmatpush1.msra.mxu0 %v682
    %712 = vmatprep.subr.mxu0 0.0
    %713 = vmatpush1.msra.mxu0 %v683
    %714 = vmatprep.subr.mxu0 0.0
    %715 = vmatpush1.msra.mxu0 %v684
    %716 = vmatprep.subr.mxu0 0.0
    %717 = vmatpush1.msra.mxu0 %v685
    %718 = vmatprep.subr.mxu0 0.0
    %719 = vmatpush1.msra.mxu0 %v686
    %720 = vmatprep.subr.mxu0 0.0
    %721 = vmatpush1.msra.mxu0 %v687
    %722 = vmatprep.subr.mxu0 0.0
    %723 = vmatpush1.msra.mxu0 %v688
    %724 = vmatprep.subr.mxu0 0.0
    %725 = vmatpush1.msra.mxu0 %v689
    %726 = vmatprep.subr.mxu0 0.0
    %727 = vmatpush1.msra.mxu0 %v690
    %728 = vmatprep.subr.mxu0 0.0
    %729 = vmatpush1.msra.mxu0 %v691
    %730 = vmatprep.subr.mxu0 0.0
    %731 = vmatpush1.msra.mxu0 %v692
    %732 = vmatprep.subr.mxu0 0.0
    %733 = vmatpush1.msra.mxu0 0.0
    %734 = vmatprep.subr.mxu0 0.0
    %735 = vmatpush1.msra.mxu0 0.0
    %736 = vmatprep.subr.mxu0 0.0
    %737 = vmatpush1.msra.mxu0 0.0
    %738 = vmatprep.subr.mxu0 0.0
    %739 = vmatpush1.msra.mxu0 0.0
    %740 = vmatprep.subr.mxu0 0.0
    %741 = vmatpush1.msra.mxu0 0.0
    %742 = vmatprep.subr.mxu0 0.0
    %743 = vmatpush1.msra.mxu0 0.0
    %744 = vmatprep.subr.mxu0 0.0
    %745 = vmatpush1.msra.mxu0 0.0
    %746 = vmatprep.subr.mxu0 0.0
    %747 = vmatpush1.msra.mxu0 0.0
    %748 = vmatprep.subr.mxu0 0.0
    %749 = vmatpush1.msra.mxu0 0.0
    %750 = vmatprep.subr.mxu0 0.0
    %751 = vmatpush1.msra.mxu0 0.0
    %752 = vmatprep.subr.mxu0 0.0
    %753 = vmatpush1.msra.mxu0 0.0
    %754 = vmatprep.subr.mxu0 0.0
    %755 = vmatpush1.msra.mxu0 0.0
    %756 = vmatprep.subr.mxu0 0.0
    %757 = vmatpush1.msra.mxu0 0.0
    %758 = vmatprep.subr.mxu0 0.0
    %759 = vmatpush1.msra.mxu0 0.0
    %760 = vmatprep.subr.mxu0 0.0
    %761 = vmatpush1.msra.mxu0 0.0
    %762 = vmatprep.subr.mxu0 0.0
    %763 = vmatpush1.msra.mxu0 0.0
    %764 = vmatprep.mubr.f32.mxu0 0.0
    %765 = vmatmul.mubr.f32.gmra.mrb[0].mxu0 %v676
    %v766 = vpop.f32.mrb[0].mxu0
    %v767 = vadd.f32 %v698, %v766
    %v768 = vpop.f32.mrb[0].mxu0
    %769 = vdwg.mxu0
    %770 = vst [vmem:[#allocation5] sm:$0xff] %v767
    // Predicated region
    $region30: #{tpu_custom_call.1} parent=1 // pred_check
      _
    $region31: #{tpu_custom_call.1} parent=1 // pred_check_branch
      %772 = sbr.rel (0) target = $region33
    $region32: #{tpu_custom_call.1} parent=1 // pred_region
      %s774 = ssub.s32 128, 128
      %775 = vsyncadd [#allocation4], %s774
      %s777 = sshll.u32 [#allocation5], 4
      %s778 = int_to_ptr.vmem [resolvable:$true] %s777
      %780 = dma.vmem_to_hbm [thread:$0]  %s778, 128, %s6, [#allocation4]
    $region33: #{tpu_custom_call.1} parent=1 // pred_fallthru
      _
    // Predicated region
    $region34: #{tpu_custom_call.1} parent=1 // pred_check
      _
    $region35: #{tpu_custom_call.1} parent=1 // pred_check_branch
      %782 = sbr.rel (0) target = $region37
    $region36: #{tpu_custom_call.1} parent=1 // pred_region
      %783 = dma.done [#allocation4], 128
    $region37: #{tpu_custom_call.1} parent=1 // pred_fallthru
      _
    %784 = vsyncpa [#allocation3], 1
    %785 = vsyncpa [#allocation4], 1

</llo_original>
